<compile_context>
chip_gen: v5e
topology: v5e:2x2
jax: 0.10.0
libtpu: 0.0.40
codegen_flags: <defaults>
</compile_context>

<pallas_src>
import functools

import jax
import jax.numpy as jnp
from jax.experimental import pallas as pl
from jax.experimental.pallas import tpu as pltpu

KSIZE = 3  # kernel_size=3, padding=1 (kernel_size // 2)
_OFFSETS = tuple((oy, ox) for oy in (-1, 0, 1) for ox in (-1, 0, 1))
_NTAPS = len(_OFFSETS)  # 9


def _spatial_attention_kernel(x_ref, wm_ref, o_ref, sum_ref, max_ref, *,
                              width, c_rem):
    """Grid = (batch blocks, channel blocks); channel axis is the reduction.

    x_ref:   (B_TILE, C_TILE, S) input block, S = H*W on the lane axis.
    wm_ref:  (18, S) f32 per-tap conv weight * zero-pad boundary mask;
             rows 0..8  -> avg-channel taps (with the mean's 1/C folded in),
             rows 9..17 -> max-channel taps.
    o_ref:   (B_TILE, S) output block (size-1 middle dim squeezed away).
    sum_ref, max_ref: (B_TILE, S) f32 running channel-sum / channel-max.
    c_rem:   static count of valid channels in the last channel block
             (0 means the channel tile divides C exactly).
    """
    ci = pl.program_id(1)
    last = pl.num_programs(1) - 1
    b_tile, s_total = sum_ref.shape

    @pl.when(ci == 0)
    def _init():
        sum_ref[...] = jnp.zeros_like(sum_ref)
        max_ref[...] = jnp.full_like(max_ref, -jnp.inf)

    def _accumulate(x_block):
        # Whole-block update: one dense add / max per grid step (no per-sample
        # masked sub-vreg read-modify-writes).
        xf = x_block.astype(jnp.float32)                    # (B_TILE, c, S)
        sum_ref[...] = sum_ref[...] + jnp.sum(xf, axis=1)
        max_ref[...] = jnp.maximum(max_ref[...], jnp.max(xf, axis=1))

    if c_rem == 0:
        _accumulate(x_ref[...])
    else:
        @pl.when(ci != last)
        def _full():
            _accumulate(x_ref[...])

        @pl.when(ci == last)
        def _tail():
            # Ragged last channel block: only the first c_rem rows are real.
            _accumulate(x_ref[:, pl.ds(0, c_rem), :])

    @pl.when(ci == last)
    def _finalize():
        avg = sum_ref[...]             # 1/C already folded into wm rows 0..8
        mx = max_ref[...]
        acc = jnp.zeros((b_tile, s_total), jnp.float32)
        for tap, (oy, ox) in enumerate(_OFFSETS):
            # shifted[s] = map[s + oy*W + ox]; wrap-around / cross-row leakage
            # is zeroed by the boundary masks baked into wm_ref.
            shift = (-(oy * width + ox)) % s_total
            sa = pltpu.roll(avg, shift, 1) if shift else avg
            sm = pltpu.roll(mx, shift, 1) if shift else mx
            w_avg = wm_ref[pl.ds(tap, 1), :]                # (1, S)
            w_max = wm_ref[pl.ds(_NTAPS + tap, 1), :]       # (1, S)
            acc = acc + w_avg * sa + w_max * sm
        o_ref[...] = jax.nn.sigmoid(acc).astype(o_ref.dtype)


def _build_weight_masks(conv_weight, channels, height, width):
    """(18, S) table: per-tap conv weight times zero-pad boundary mask.

    Rows 0..8 are the avg-channel taps (pre-scaled by 1/C so the kernel can
    accumulate a plain channel sum); rows 9..17 are the max-channel taps.
    """
    s_total = height * width
    h_idx = jnp.arange(s_total, dtype=jnp.int32) // width
    w_idx = jnp.arange(s_total, dtype=jnp.int32) % width
    w = conv_weight.reshape(2, KSIZE, KSIZE).astype(jnp.float32)
    rows = []
    for cin in range(2):
        scale = (1.0 / channels) if cin == 0 else 1.0       # fold mean's 1/C
        for oy, ox in _OFFSETS:
            valid = ((h_idx + oy >= 0) & (h_idx + oy < height)
                     & (w_idx + ox >= 0) & (w_idx + ox < width))
            rows.append(valid.astype(jnp.float32)
                        * (w[cin, oy + 1, ox + 1] * scale))
    return jnp.stack(rows, axis=0)                           # (18, S)


def _pick_tiles(n, channels, s_total, itemsize, budget_bytes):
    """Choose (b_tile, c_tile) so the input block stays within budget_bytes.

    b_tile divides N exactly (capped at 8, and <= N // 2 whenever N >= 2 so the
    "parallel" batch axis has >= 2 blocks for megacore sharding).  c_tile is
    all of C if it fits, else a dtype-aware multiple-of-step tile; a ragged
    last channel block is handled inside the kernel (never a whole-C fallback).
    """
    bpe = max(itemsize, 4)                    # f32 accumulation working set
    step = {4: 8, 2: 16, 1: 32}.get(itemsize, 8)

    b_cap = 1 if n <= 1 else max(1, min(n // 2, 8))
    b_tile = 1
    for d in range(1, b_cap + 1):
        if n % d == 0 and d * min(channels, step) * s_total * bpe <= budget_bytes:
            b_tile = d

    if b_tile * channels * s_total * bpe <= budget_bytes:
        return b_tile, channels

    max_c = budget_bytes // (b_tile * s_total * bpe)
    c_tile = max(step, (max_c // step) * step)
    c_tile = min(c_tile, channels)
    # Prefer an exact multiple-of-step divisor of C (skips the ragged tail) as
    # long as it does not shrink the block by more than 2x.
    best_div = 0
    for t in range(step, c_tile + 1, step):
        if channels % t == 0:
            best_div = t
    if best_div and best_div * 2 >= c_tile:
        c_tile = best_div
    return b_tile, c_tile


def spatial_attention(x, conv_weight, *, block_budget_bytes=8 << 20):
    """x: (N, C, H, W); conv_weight: (1, 2, K, K) as nn.Conv2d(2, 1, K, bias=False)."""
    n, c, h, w = x.shape
    s_total = h * w
    x_flat = x.reshape(n, c, s_total)          # free reshape: spatial -> lanes
    wm = _build_weight_masks(conv_weight, c, h, w)

    b_tile, c_tile = _pick_tiles(n, c, s_total, x.dtype.itemsize,
                                 block_budget_bytes)
    grid = (n // b_tile, pl.cdiv(c, c_tile))
    c_rem = c % c_tile

    kernel = functools.partial(_spatial_attention_kernel, width=w, c_rem=c_rem)

    cost = pl.CostEstimate(
        flops=2 * n * c * s_total + 4 * _NTAPS * n * s_total,
        transcendentals=n * s_total,
        bytes_accessed=(n * c * s_total * x.dtype.itemsize
                        + n * s_total * x.dtype.itemsize
                        + int(wm.size) * 4))

    out_flat = pl.pallas_call(
        kernel,
        out_shape=jax.ShapeDtypeStruct((n, 1, s_total), x.dtype),
        grid=grid,
        in_specs=[
            pl.BlockSpec((b_tile, c_tile, s_total), lambda b, k: (b, k, 0)),
            pl.BlockSpec((2 * _NTAPS, s_total), lambda b, k: (0, 0)),
        ],
        # Size-1 dim squeezed -> lane-dense (b_tile, S) stores; b_tile need not
        # be a multiple of 8 because the block's last two dims are full dims.
        out_specs=pl.BlockSpec((b_tile, None, s_total), lambda b, k: (b, 0, 0)),
        scratch_shapes=[
            pltpu.VMEM((b_tile, s_total), jnp.float32),   # running channel sum
            pltpu.VMEM((b_tile, s_total), jnp.float32),   # running channel max
        ],
        compiler_params=pltpu.CompilerParams(
            dimension_semantics=("parallel", "arbitrary"),
            vmem_limit_bytes=48 * 1024 * 1024,
        ),
        cost_estimate=cost,
    )(x_flat, wm)
    return out_flat.reshape(n, 1, h, w)


def spatial_attention_reference(x, conv_weight):
    avg = jnp.mean(x, axis=1, keepdims=True)
    mx = jnp.max(x, axis=1, keepdims=True)
    cat = jnp.concatenate([avg, mx], axis=1)
    out = jax.lax.conv_general_dilated(
        cat, conv_weight, window_strides=(1, 1),
        padding=((KSIZE // 2, KSIZE // 2), (KSIZE // 2, KSIZE // 2)),
        dimension_numbers=("NCHW", "OIHW", "NCHW"))
    return jax.nn.sigmoid(out)


if __name__ == "__main__":
    key = jax.random.PRNGKey(0)
    kx, kw = jax.random.split(key)

    N, C, H, W = 2, 4, 16, 16
    x = jax.random.normal(kx, (N, C, H, W), dtype=jnp.float32)

    # Deterministic Conv2d(2, 1, 3, bias=False) weight init (PyTorch-style
    # uniform(-1/sqrt(fan_in), 1/sqrt(fan_in)), fan_in = 2*3*3).
    fan_in = 2 * KSIZE * KSIZE
    bound = 1.0 / (fan_in ** 0.5)
    conv_w = jax.random.uniform(
        kw, (1, 2, KSIZE, KSIZE), dtype=jnp.float32, minval=-bound, maxval=bound)

    out = jax.block_until_ready(spatial_attention(x, conv_w))
    ref = jax.block_until_ready(spatial_attention_reference(x, conv_w))

    assert out.shape == (N, 1, H, W), out.shape
    assert jnp.allclose(out, ref, atol=1e-5, rtol=1e-5), (
        float(jnp.max(jnp.abs(out - ref))))
    print("KERNEL_OK")
</pallas_src>

<mosaic_0001>
module attributes {stable_mosaic.version = 11 : i64} {
  func.func @_spatial_attention_kernel(%arg0: i32, %arg1: i32, %arg2: memref<1x4x256xf32, #tpu.memory_space<vmem>>, %arg3: memref<18x256xf32, #tpu.memory_space<vmem>>, %arg4: memref<1x1x256xf32, #tpu.memory_space<vmem>>, %arg5: memref<1x256xf32, #tpu.memory_space<vmem>>, %arg6: memref<1x256xf32, #tpu.memory_space<vmem>>) attributes {dimension_semantics = [#tpu.dimension_semantics<parallel>, #tpu.dimension_semantics<arbitrary>], iteration_bounds = array<i64: 2, 1>, scalar_prefetch = 0 : i64, scratch_operands = 2 : i64, tpu.core_type = #tpu.core_type<tc>, window_params = [{transform_indices = @transform_0, window_bounds = array<i64: 1, 4, 256>}, {pipeline_mode = #tpu.pipeline_mode<synchronous>, transform_indices = @transform_1, window_bounds = array<i64: 18, 256>}, {transform_indices = @transform_2, window_bounds = array<i64: 1, 1, 256>}]} {
    %c0_i32 = arith.constant 0 : i32
    %0 = arith.cmpi eq, %arg1, %c0_i32 : i32
    %1 = arith.extui %0 : i1 to i32
    %c0_i32_0 = arith.constant 0 : i32
    %2 = arith.cmpi ne, %1, %c0_i32_0 : i32
    scf.if %2 {
      %cst_14 = arith.constant 0.000000e+00 : f32
      %15 = vector.broadcast %cst_14 : f32 to vector<1x256xf32>
      %c0_15 = arith.constant 0 : index
      %c0_16 = arith.constant 0 : index
      %16 = vector.load %arg5[%c0_15, %c0_16] : memref<1x256xf32, #tpu.memory_space<vmem>>, vector<1x256xf32>
      tpu.vector_store %arg5[%c0_15, %c0_16], %15 {strides = array<i32>} : memref<1x256xf32, #tpu.memory_space<vmem>>, vector<1x256xf32>,
      %cst_17 = arith.constant 0xFF800000 : f32
      %17 = vector.broadcast %cst_17 : f32 to vector<1x256xf32>
      %c0_18 = arith.constant 0 : index
      %c0_19 = arith.constant 0 : index
      %18 = vector.load %arg6[%c0_18, %c0_19] : memref<1x256xf32, #tpu.memory_space<vmem>>, vector<1x256xf32>
      tpu.vector_store %arg6[%c0_18, %c0_19], %17 {strides = array<i32>} : memref<1x256xf32, #tpu.memory_space<vmem>>, vector<1x256xf32>,
    } else {
    }
    %c0 = arith.constant 0 : index
    %c0_1 = arith.constant 0 : index
    %c0_2 = arith.constant 0 : index
    %3 = vector.load %arg2[%c0, %c0_1, %c0_2] : memref<1x4x256xf32, #tpu.memory_space<vmem>>, vector<1x4x256xf32>
    %c0_3 = arith.constant 0 : index
    %c0_4 = arith.constant 0 : index
    %4 = vector.load %arg5[%c0_3, %c0_4] : memref<1x256xf32, #tpu.memory_space<vmem>>, vector<1x256xf32>
    %cst = arith.constant dense<0.000000e+00> : vector<1x256xf32>
    %5 = vector.multi_reduction <add>, %3, %cst [1] : vector<1x4x256xf32> to vector<1x256xf32>
    %6 = arith.addf %4, %5 : vector<1x256xf32>
    %c0_5 = arith.constant 0 : index
    %c0_6 = arith.constant 0 : index
    %7 = vector.load %arg5[%c0_5, %c0_6] : memref<1x256xf32, #tpu.memory_space<vmem>>, vector<1x256xf32>
    tpu.vector_store %arg5[%c0_5, %c0_6], %6 {strides = array<i32>} : memref<1x256xf32, #tpu.memory_space<vmem>>, vector<1x256xf32>,
    %c0_7 = arith.constant 0 : index
    %c0_8 = arith.constant 0 : index
    %8 = vector.load %arg6[%c0_7, %c0_8] : memref<1x256xf32, #tpu.memory_space<vmem>>, vector<1x256xf32>
    %cst_9 = arith.constant dense<0xFF800000> : vector<1x256xf32>
    %9 = vector.multi_reduction <maximumf>, %3, %cst_9 [1] : vector<1x4x256xf32> to vector<1x256xf32>
    %10 = arith.maximumf %8, %9 : vector<1x256xf32>
    %c0_10 = arith.constant 0 : index
    %c0_11 = arith.constant 0 : index
    %11 = vector.load %arg6[%c0_10, %c0_11] : memref<1x256xf32, #tpu.memory_space<vmem>>, vector<1x256xf32>
    tpu.vector_store %arg6[%c0_10, %c0_11], %10 {strides = array<i32>} : memref<1x256xf32, #tpu.memory_space<vmem>>, vector<1x256xf32>,
    %c0_i32_12 = arith.constant 0 : i32
    %12 = arith.cmpi eq, %arg1, %c0_i32_12 : i32
    %13 = arith.extui %12 : i1 to i32
    %c0_i32_13 = arith.constant 0 : i32
    %14 = arith.cmpi ne, %13, %c0_i32_13 : i32
    scf.if %14 {
      %c0_14 = arith.constant 0 : index
      %c0_15 = arith.constant 0 : index
      %15 = vector.load %arg5[%c0_14, %c0_15] : memref<1x256xf32, #tpu.memory_space<vmem>>, vector<1x256xf32>
      %c0_16 = arith.constant 0 : index
      %c0_17 = arith.constant 0 : index
      %16 = vector.load %arg6[%c0_16, %c0_17] : memref<1x256xf32, #tpu.memory_space<vmem>>, vector<1x256xf32>
      %cst_18 = arith.constant 0.000000e+00 : f32
      %17 = vector.broadcast %cst_18 : f32 to vector<1x256xf32>
      %c17_i32 = arith.constant 17 : i32
      %18 = tpu.dynamic_rotate %15 by %c17_i32 dim 1 : vector<1x256xf32>, i32 -> vector<1x256xf32>
      %c17_i32_19 = arith.constant 17 : i32
      %19 = tpu.dynamic_rotate %16 by %c17_i32_19 dim 1 : vector<1x256xf32>, i32 -> vector<1x256xf32>
      %c0_20 = arith.constant 0 : index
      %c0_21 = arith.constant 0 : index
      %20 = vector.load %arg3[%c0_20, %c0_21] : memref<18x256xf32, #tpu.memory_space<vmem>>, vector<1x256xf32>
      %c9 = arith.constant 9 : index
      %c0_22 = arith.constant 0 : index
      %21 = vector.load %arg3[%c9, %c0_22] : memref<18x256xf32, #tpu.memory_space<vmem>>, vector<1x256xf32>
      %22 = arith.mulf %20, %18 : vector<1x256xf32>
      %23 = arith.addf %17, %22 : vector<1x256xf32>
      %24 = arith.mulf %21, %19 : vector<1x256xf32>
      %25 = arith.addf %23, %24 : vector<1x256xf32>
      %c16_i32 = arith.constant 16 : i32
      %26 = tpu.dynamic_rotate %15 by %c16_i32 dim 1 : vector<1x256xf32>, i32 -> vector<1x256xf32>
      %c16_i32_23 = arith.constant 16 : i32
      %27 = tpu.dynamic_rotate %16 by %c16_i32_23 dim 1 : vector<1x256xf32>, i32 -> vector<1x256xf32>
      %c1 = arith.constant 1 : index
      %c0_24 = arith.constant 0 : index
      %28 = vector.load %arg3[%c1, %c0_24] : memref<18x256xf32, #tpu.memory_space<vmem>>, vector<1x256xf32>
      %c10 = arith.constant 10 : index
      %c0_25 = arith.constant 0 : index
      %29 = vector.load %arg3[%c10, %c0_25] : memref<18x256xf32, #tpu.memory_space<vmem>>, vector<1x256xf32>
      %30 = arith.mulf %28, %26 : vector<1x256xf32>
      %31 = arith.addf %25, %30 : vector<1x256xf32>
      %32 = arith.mulf %29, %27 : vector<1x256xf32>
      %33 = arith.addf %31, %32 : vector<1x256xf32>
      %c15_i32 = arith.constant 15 : i32
      %34 = tpu.dynamic_rotate %15 by %c15_i32 dim 1 : vector<1x256xf32>, i32 -> vector<1x256xf32>
      %c15_i32_26 = arith.constant 15 : i32
      %35 = tpu.dynamic_rotate %16 by %c15_i32_26 dim 1 : vector<1x256xf32>, i32 -> vector<1x256xf32>
      %c2 = arith.constant 2 : index
      %c0_27 = arith.constant 0 : index
      %36 = vector.load %arg3[%c2, %c0_27] : memref<18x256xf32, #tpu.memory_space<vmem>>, vector<1x256xf32>
      %c11 = arith.constant 11 : index
      %c0_28 = arith.constant 0 : index
      %37 = vector.load %arg3[%c11, %c0_28] : memref<18x256xf32, #tpu.memory_space<vmem>>, vector<1x256xf32>
      %38 = arith.mulf %36, %34 : vector<1x256xf32>
      %39 = arith.addf %33, %38 : vector<1x256xf32>
      %40 = arith.mulf %37, %35 : vector<1x256xf32>
      %41 = arith.addf %39, %40 : vector<1x256xf32>
      %c1_i32 = arith.constant 1 : i32
      %42 = tpu.dynamic_rotate %15 by %c1_i32 dim 1 : vector<1x256xf32>, i32 -> vector<1x256xf32>
      %c1_i32_29 = arith.constant 1 : i32
      %43 = tpu.dynamic_rotate %16 by %c1_i32_29 dim 1 : vector<1x256xf32>, i32 -> vector<1x256xf32>
      %c3 = arith.constant 3 : index
      %c0_30 = arith.constant 0 : index
      %44 = vector.load %arg3[%c3, %c0_30] : memref<18x256xf32, #tpu.memory_space<vmem>>, vector<1x256xf32>
      %c12 = arith.constant 12 : index
      %c0_31 = arith.constant 0 : index
      %45 = vector.load %arg3[%c12, %c0_31] : memref<18x256xf32, #tpu.memory_space<vmem>>, vector<1x256xf32>
      %46 = arith.mulf %44, %42 : vector<1x256xf32>
      %47 = arith.addf %41, %46 : vector<1x256xf32>
      %48 = arith.mulf %45, %43 : vector<1x256xf32>
      %49 = arith.addf %47, %48 : vector<1x256xf32>
      %c4 = arith.constant 4 : index
      %c0_32 = arith.constant 0 : index
      %50 = vector.load %arg3[%c4, %c0_32] : memref<18x256xf32, #tpu.memory_space<vmem>>, vector<1x256xf32>
      %c13 = arith.constant 13 : index
      %c0_33 = arith.constant 0 : index
      %51 = vector.load %arg3[%c13, %c0_33] : memref<18x256xf32, #tpu.memory_space<vmem>>, vector<1x256xf32>
      %52 = arith.mulf %50, %15 : vector<1x256xf32>
      %53 = arith.addf %49, %52 : vector<1x256xf32>
      %54 = arith.mulf %51, %16 : vector<1x256xf32>
      %55 = arith.addf %53, %54 : vector<1x256xf32>
      %c255_i32 = arith.constant 255 : i32
      %56 = tpu.dynamic_rotate %15 by %c255_i32 dim 1 : vector<1x256xf32>, i32 -> vector<1x256xf32>
      %c255_i32_34 = arith.constant 255 : i32
      %57 = tpu.dynamic_rotate %16 by %c255_i32_34 dim 1 : vector<1x256xf32>, i32 -> vector<1x256xf32>
      %c5 = arith.constant 5 : index
      %c0_35 = arith.constant 0 : index
      %58 = vector.load %arg3[%c5, %c0_35] : memref<18x256xf32, #tpu.memory_space<vmem>>, vector<1x256xf32>
      %c14 = arith.constant 14 : index
      %c0_36 = arith.constant 0 : index
      %59 = vector.load %arg3[%c14, %c0_36] : memref<18x256xf32, #tpu.memory_space<vmem>>, vector<1x256xf32>
      %60 = arith.mulf %58, %56 : vector<1x256xf32>
      %61 = arith.addf %55, %60 : vector<1x256xf32>
      %62 = arith.mulf %59, %57 : vector<1x256xf32>
      %63 = arith.addf %61, %62 : vector<1x256xf32>
      %c241_i32 = arith.constant 241 : i32
      %64 = tpu.dynamic_rotate %15 by %c241_i32 dim 1 : vector<1x256xf32>, i32 -> vector<1x256xf32>
      %c241_i32_37 = arith.constant 241 : i32
      %65 = tpu.dynamic_rotate %16 by %c241_i32_37 dim 1 : vector<1x256xf32>, i32 -> vector<1x256xf32>
      %c6 = arith.constant 6 : index
      %c0_38 = arith.constant 0 : index
      %66 = vector.load %arg3[%c6, %c0_38] : memref<18x256xf32, #tpu.memory_space<vmem>>, vector<1x256xf32>
      %c15 = arith.constant 15 : index
      %c0_39 = arith.constant 0 : index
      %67 = vector.load %arg3[%c15, %c0_39] : memref<18x256xf32, #tpu.memory_space<vmem>>, vector<1x256xf32>
      %68 = arith.mulf %66, %64 : vector<1x256xf32>
      %69 = arith.addf %63, %68 : vector<1x256xf32>
      %70 = arith.mulf %67, %65 : vector<1x256xf32>
      %71 = arith.addf %69, %70 : vector<1x256xf32>
      %c240_i32 = arith.constant 240 : i32
      %72 = tpu.dynamic_rotate %15 by %c240_i32 dim 1 : vector<1x256xf32>, i32 -> vector<1x256xf32>
      %c240_i32_40 = arith.constant 240 : i32
      %73 = tpu.dynamic_rotate %16 by %c240_i32_40 dim 1 : vector<1x256xf32>, i32 -> vector<1x256xf32>
      %c7 = arith.constant 7 : index
      %c0_41 = arith.constant 0 : index
      %74 = vector.load %arg3[%c7, %c0_41] : memref<18x256xf32, #tpu.memory_space<vmem>>, vector<1x256xf32>
      %c16 = arith.constant 16 : index
      %c0_42 = arith.constant 0 : index
      %75 = vector.load %arg3[%c16, %c0_42] : memref<18x256xf32, #tpu.memory_space<vmem>>, vector<1x256xf32>
      %76 = arith.mulf %74, %72 : vector<1x256xf32>
      %77 = arith.addf %71, %76 : vector<1x256xf32>
      %78 = arith.mulf %75, %73 : vector<1x256xf32>
      %79 = arith.addf %77, %78 : vector<1x256xf32>
      %c239_i32 = arith.constant 239 : i32
      %80 = tpu.dynamic_rotate %15 by %c239_i32 dim 1 : vector<1x256xf32>, i32 -> vector<1x256xf32>
      %c239_i32_43 = arith.constant 239 : i32
      %81 = tpu.dynamic_rotate %16 by %c239_i32_43 dim 1 : vector<1x256xf32>, i32 -> vector<1x256xf32>
      %c8 = arith.constant 8 : index
      %c0_44 = arith.constant 0 : index
      %82 = vector.load %arg3[%c8, %c0_44] : memref<18x256xf32, #tpu.memory_space<vmem>>, vector<1x256xf32>
      %c17 = arith.constant 17 : index
      %c0_45 = arith.constant 0 : index
      %83 = vector.load %arg3[%c17, %c0_45] : memref<18x256xf32, #tpu.memory_space<vmem>>, vector<1x256xf32>
      %84 = arith.mulf %82, %80 : vector<1x256xf32>
      %85 = arith.addf %79, %84 : vector<1x256xf32>
      %86 = arith.mulf %83, %81 : vector<1x256xf32>
      %87 = arith.addf %85, %86 : vector<1x256xf32>
      %88 = arith.negf %87 : vector<1x256xf32>
      %89 = math.exp %88 : vector<1x256xf32>
      %cst_46 = arith.constant 1.000000e+00 : f32
      %90 = vector.broadcast %cst_46 : f32 to vector<1x256xf32>
      %91 = arith.addf %90, %89 : vector<1x256xf32>
      %92 = arith.divf %90, %91 : vector<1x256xf32>
      %c0_47 = arith.constant 0 : index
      %c0_48 = arith.constant 0 : index
      %c0_49 = arith.constant 0 : index
      %93 = vector.load %arg4[%c0_47, %c0_48, %c0_49] : memref<1x1x256xf32, #tpu.memory_space<vmem>>, vector<1x1x256xf32>
      %94 = vector.shape_cast %93 : vector<1x1x256xf32> to vector<1x256xf32>
      %95 = vector.shape_cast %92 : vector<1x256xf32> to vector<1x1x256xf32>
      tpu.vector_store %arg4[%c0_47, %c0_48, %c0_49], %95 {strides = array<i32>} : memref<1x1x256xf32, #tpu.memory_space<vmem>>, vector<1x1x256xf32>,
    } else {
    }
    return
  }
  func.func @transform_0(%arg0: i32, %arg1: i32) -> (i32, i32, i32) {
    %c0_i32 = arith.constant 0 : i32
    %c0_i32_0 = arith.constant 0 : i32
    return %arg0, %arg1, %c0_i32 : i32, i32, i32
  }
  func.func @transform_1(%arg0: i32, %arg1: i32) -> (i32, i32) {
    %c0_i32 = arith.constant 0 : i32
    %c0_i32_0 = arith.constant 0 : i32
    %c0_i32_1 = arith.constant 0 : i32
    return %c0_i32, %c0_i32_0 : i32, i32
  }
  func.func @transform_2(%arg0: i32, %arg1: i32) -> (i32, i32, i32) {
    %c0_i32 = arith.constant 0 : i32
    %c0_i32_0 = arith.constant 0 : i32
    %c0_i32_1 = arith.constant 0 : i32
    return %arg0, %c0_i32, %c0_i32_0 : i32, i32, i32
  }
}

</mosaic_0001>

<llo_original>
// kernel: tpu_custom_call.1
$region0: #{tpu_custom_call.1}
  #allocation0 [shape = 'u32[]', space=smem, size = 0x4, offset = 0x4, fixed_abs, tag = 'smem constant byte address 0x4 - core index']
  #allocation1 [shape = 'u32[72,128]{1,0:T(1,128)}', space=vmem, size = 0x9000, scoped, tag = 'internal scratch']
  #allocation2 [shape = 'f32[1,256]{1,0:T(1,128)}', space=vmem, size = 0x400, scoped, tag = 'scratch operand']
  #allocation3 [shape = 'f32[1,256]{1,0:T(1,128)}', space=vmem, size = 0x400, scoped, tag = 'scratch operand']
  %s0 = inlined_call_operand.hbm [shape: f32[2,4,256], index: 0, kind: input, shape index: {}]
  %s1 = inlined_call_operand.hbm [shape: f32[18,256], index: 1, kind: input, shape index: {}]
  %s2 = inlined_call_operand.hbm [shape: f32[2,1,256], index: 2, kind: output, shape index: {}]
  %s3 = sld [smem:[#allocation0]]
  $region57: #{tpu_custom_call.1} parent=0
    _
  %s5 = ssub.s32 1, %s3
  %s6 = scalar_select 0, %s5, %s3
  $region1: #{tpu_custom_call.1} parent=0
    #allocation4 [shape = 'u8[8192]{0}', space=vmem, size = 0x2000, scoped, tag = 'input window, operand 0']
    #allocation5 [shape = 's32[2]{0}', space=sflag, size = 0x8, scoped, tag = 'scoped memory for tpu_custom_call.1']
    #allocation6 [shape = 's32[2]{0}', space=sflag, size = 0x8, scoped, tag = 'scoped memory for tpu_custom_call.1']
    #allocation7 [shape = 'u8[24576]{0}', space=vmem, size = 0x6000, scoped, tag = 'input window, operand 1, single buffered']
    #allocation8 [shape = 's32[1]{0}', space=sflag, size = 0x4, scoped, tag = 'scoped memory for tpu_custom_call.1']
    #allocation9 [shape = 'u8[2048]{0}', space=vmem, size = 0x800, scoped, tag = 'output window, operand 0']
    %7 = vsyncpa [#allocation5], 0
    %s8 = scalar_lea.sflag [#allocation5], 1
    %9 = vsyncpa %s8, 0
    %10 = vsyncpa [#allocation8], 0
    %11 = vsyncpa [#allocation6], 0
    %s12 = scalar_lea.sflag [#allocation6], 1
    %13 = vsyncpa %s12, 0
    loop: start=0, step=1, limit=4
    $region2: #{tpu_custom_call.1} parent=1 // loop_pre_header
      _
    $region3: #{tpu_custom_call.1} parent=1 // loop_header
      %s15 = sphi 0, %s19
      %p16 = scmp.ge.s32.totalorder %s15, 4
      %s22 = sphi 0, %s34
      %s23 = sphi 0, %s30
      %s24 = sphi 0, %s22
      %s25 = sphi 0, %s23
      %s26 = sphi 0, %s24
      %s27 = sphi 0, %s25
      %s39 = sphi 0, %s41
      %s42 = sphi 0, %s39
      %s43 = sphi 0, %s42
      %s59 = sphi 0, %s43
      %s63 = sphi 0, %s63
      %s65 = sphi 0, %s63
      %s66 = sphi 0, %s65
      %s80 = sphi 0, %s66
      %s86 = sphi 0, %s88
      %s89 = sphi 0, %s86
      %s90 = sphi 0, %s89
      %s106 = sphi 0, %s90
    $region4: #{tpu_custom_call.1} parent=1 // loop_header_branch
      %18 = sbr.rel (%p16) target = $region8
    $region5: #{tpu_custom_call.1} parent=1 // loop_body
      %s20 = ssub.s32 %s15, 1
      %s21 = ssub.s32 %s15, 2
      %s28 = sadd.s32 1, %s23
      %p29 = scmp.ge.s32.totalorder %s28, 1
      %s30 = scalar_select %p29, 0, %s28
      %s31 = sadd.s32 1, %s22
      %s32 = scalar_select %p29, %s31, %s22
      %p33 = scmp.ge.s32.totalorder %s32, 2
      %s34 = scalar_select %p33, 0, %s32
      %s35 = ssub.s32 %s22, %s34
      %s36 = ssub.s32 %s23, %s30
      %s37 = sor.u32 %s35, %s36
      %p38 = scmp.eq.s32.totalorder %s37, 0
      %s40 = sadd.s32 %s39, 1
      %s41 = scalar_select %p38, %s39, %s40
      %p44 = pneg %p38
      %p45 = scmp.eq.s32.totalorder %s15, 1
      %p46 = por %p44, %p45
      %p47 = scmp.ne.s32.totalorder %s39, %s42
      %p48 = scmp.eq.s32.totalorder %s15, 0
      %p49 = por %p47, %p48
      %p50 = scmp.ne.s32.totalorder %s39, %s42
      %p51 = scmp.eq.s32.totalorder %s20, 1
      %p52 = por %p50, %p51
      %p53 = scmp.ne.s32.totalorder %s42, %s43
      %p54 = scmp.eq.s32.totalorder %s20, 0
      %p55 = por %p53, %p54
      %p56 = scmp.ne.s32.totalorder %s42, %s43
      %p57 = scmp.eq.s32.totalorder %s21, 1
      %p58 = por %p56, %p57
      %p60 = scmp.ne.s32.totalorder %s43, %s59
      %p61 = scmp.eq.s32.totalorder %s21, 0
      %p62 = por %p60, %p61
      %s64 = sadd.s32 %s63, 1
      %p67 = scmp.eq.s32.totalorder %s15, 1
      %p68 = scmp.ne.s32.totalorder %s63, %s65
      %p69 = scmp.eq.s32.totalorder %s15, 0
      %p70 = por %p68, %p69
      %p71 = scmp.ne.s32.totalorder %s63, %s65
      %p72 = scmp.eq.s32.totalorder %s20, 1
      %p73 = por %p71, %p72
      %p74 = scmp.ne.s32.totalorder %s65, %s66
      %p75 = scmp.eq.s32.totalorder %s20, 0
      %p76 = por %p74, %p75
      %p77 = scmp.ne.s32.totalorder %s65, %s66
      %p78 = scmp.eq.s32.totalorder %s21, 1
      %p79 = por %p77, %p78
      %p81 = scmp.ne.s32.totalorder %s66, %s80
      %p82 = scmp.eq.s32.totalorder %s21, 0
      %p83 = por %p81, %p82
      %s84 = ssub.s32 %s22, %s34
      %p85 = scmp.eq.s32.totalorder %s84, 0
      %s87 = sadd.s32 %s86, 1
      %s88 = scalar_select %p85, %s86, %s87
      %p91 = pneg %p85
      %p92 = scmp.eq.s32.totalorder %s15, 1
      %p93 = por %p91, %p92
      %p94 = scmp.ne.s32.totalorder %s86, %s89
      %p95 = scmp.eq.s32.totalorder %s15, 0
      %p96 = por %p94, %p95
      %p97 = scmp.ne.s32.totalorder %s86, %s89
      %p98 = scmp.eq.s32.totalorder %s20, 1
      %p99 = por %p97, %p98
      %p100 = scmp.ne.s32.totalorder %s89, %s90
      %p101 = scmp.eq.s32.totalorder %s20, 0
      %p102 = por %p100, %p101
      %p103 = scmp.ne.s32.totalorder %s89, %s90
      %p104 = scmp.eq.s32.totalorder %s21, 1
      %p105 = por %p103, %p104
      %p107 = scmp.ne.s32.totalorder %s90, %s106
      %p108 = scmp.eq.s32.totalorder %s21, 0
      %p109 = por %p107, %p108
      %p110 = scmp.le.s32.totalorder 1, %s15
      %p111 = scmp.lt.s32.totalorder %s15, 3
      %p112 = pnand %p110, %p111
      %p113 = pneg %p112
      // Predicated region
      $region9: #{tpu_custom_call.1} parent=5 // pred_check
        _
      $region10: #{tpu_custom_call.1} parent=5 // pred_check_branch
        %115 = sbr.rel (%p112) target = $region12
      $region11: #{tpu_custom_call.1} parent=5 // pred_region
        %s116 = ssub.s32 %s15, 1
        // Predicated region
        $region13: #{tpu_custom_call.1} parent=11 // pred_check
          %p117 = pneg %p76
        $region14: #{tpu_custom_call.1} parent=11 // pred_check_branch
          %119 = sbr.rel (%p117) target = $region16
        $region15: #{tpu_custom_call.1} parent=11 // pred_region
          %121 = vsyncadd [#allocation8], 0
          %s122 = sshll.u32 %s1, 4
          %s123 = int_to_ptr.hbm [resolvable:$true] %s122
          %s124 = sshll.u32 [#allocation7], 4
          %s125 = int_to_ptr.vmem [resolvable:$true] %s124
          %130 = dma.hbm_to_vmem [thread:$0]  %s123, 768, %s125, [#allocation8], 256, 256, 16
        $region16: #{tpu_custom_call.1} parent=11 // pred_fallthru
          _
      $region12: #{tpu_custom_call.1} parent=5 // pred_fallthru
        _
      %p131 = scmp.lt.s32.totalorder %s15, 2
      // Predicated region
      $region17: #{tpu_custom_call.1} parent=5 // pred_check
        %p132 = pneg %p131
      $region18: #{tpu_custom_call.1} parent=5 // pred_check_branch
        %134 = sbr.rel (%p132) target = $region20
      $region19: #{tpu_custom_call.1} parent=5 // pred_region
        // Predicated region
        $region21: #{tpu_custom_call.1} parent=19 // pred_check
          %p135 = pneg %p49
        $region22: #{tpu_custom_call.1} parent=19 // pred_check_branch
          %137 = sbr.rel (%p135) target = $region24
        $region23: #{tpu_custom_call.1} parent=19 // pred_region
          %s138 = sand.u32 %s39, 1
          %s139 = scalar_lea.sflag [#allocation5], %s138
          %s140 = sand.u32 %s39, 1
          %s141 = smul.addr %s140, 8
          %s142 = scalar_lea.vmem [#allocation4], %s141
          %144 = vsyncadd %s139, 0
          %s145 = smul.addr %s23, 2
          %s146 = smul.addr %s22, 2
          %s147 = sadd.s32 %s145, %s146
          %s148 = smul.addr %s147, 4
          %s149 = scalar_lea.hbm %s0, %s148
          %s151 = sshll.u32 %s149, 4
          %s152 = int_to_ptr.hbm [resolvable:$true] %s151
          %s153 = sshll.u32 %s142, 4
          %s154 = int_to_ptr.vmem [resolvable:$true] %s153
          %156 = dma.hbm_to_vmem [thread:$0]  %s152, 128, %s154, %s139
        $region24: #{tpu_custom_call.1} parent=19 // pred_fallthru
          _
      $region20: #{tpu_custom_call.1} parent=5 // pred_fallthru
        _
      %p157 = scmp.le.s32.totalorder 1, %s15
      %p158 = scmp.lt.s32.totalorder %s15, 3
      %p159 = pnand %p157, %p158
      %p160 = pneg %p159
      // Predicated region
      $region25: #{tpu_custom_call.1} parent=5 // pred_check
        _
      $region26: #{tpu_custom_call.1} parent=5 // pred_check_branch
        %162 = sbr.rel (%p159) target = $region28
      $region27: #{tpu_custom_call.1} parent=5 // pred_region
        %s163 = ssub.s32 %s15, 1
        %s164 = sand.u32 %s42, 1
        %s165 = scalar_lea.sflag [#allocation5], %s164
        %s166 = sand.u32 %s42, 1
        %s167 = smul.addr %s166, 8
        %s168 = scalar_lea.vmem [#allocation4], %s167
        // Predicated region
        $region29: #{tpu_custom_call.1} parent=27 // pred_check
          %p169 = pneg %p55
        $region30: #{tpu_custom_call.1} parent=27 // pred_check_branch
          %171 = sbr.rel (%p169) target = $region32
        $region31: #{tpu_custom_call.1} parent=27 // pred_region
          %173 = dma.done %s165, 128
        $region32: #{tpu_custom_call.1} parent=27 // pred_fallthru
          _
        // Predicated region
        $region33: #{tpu_custom_call.1} parent=27 // pred_check
          %p174 = pneg %p76
        $region34: #{tpu_custom_call.1} parent=27 // pred_check_branch
          %176 = sbr.rel (%p174) target = $region36
        $region35: #{tpu_custom_call.1} parent=27 // pred_region
          %178 = dma.done [#allocation8], 768
        $region36: #{tpu_custom_call.1} parent=27 // pred_fallthru
          _
        %s179 = sand.u32 %s42, 1
        %s180 = scalar_lea.sflag [#allocation5], %s179
        %s181 = sand.u32 %s42, 1
        %s182 = smul.addr %s181, 8
        %s183 = scalar_lea.vmem [#allocation4], %s182
        %p184 = pneg %p55
        %p185 = pneg %p52
        %p186 = pneg %p76
        %p187 = pneg %p73
        %p188 = pneg %p102
        %p189 = pneg %p99
        %s190 = sand.u32 %s89, 1
        %s191 = scalar_lea.sflag [#allocation6], %s190
        %s192 = sand.u32 %s89, 1
        %s193 = smul.addr %s192, 2
        %s194 = scalar_lea.vmem [#allocation9], %s193
        %p195 = scmp.eq.s32.totalorder %s25, 0
        // Predicated region
        $region37: #{tpu_custom_call.1} parent=27 // pred_check
          %p196 = pneg %p195
        $region38: #{tpu_custom_call.1} parent=27 // pred_check_branch
          %198 = sbr.rel (%p196) target = $region40
        $region39: #{tpu_custom_call.1} parent=27 // pred_region
          %v199 = vlaneseq
          %vm200 = vcmp.ge.s32.totalorder %v199, 0
          %vm201 = vcmp.lt.s32.totalorder %v199, 256
          %vm202 = vmand %vm200, %vm201
          %203 = vst.msk [vmem:[#allocation2] sm:$0x3] %vm202, 0.0
          %204 = vst.msk [vmem:[#allocation3] sm:$0x3] %vm202, -inf
        $region40: #{tpu_custom_call.1} parent=27 // pred_fallthru
          _
        %v205 = vld [vmem:[%s168] sm:$0xff]
        %v206 = vld [vmem:[#allocation2] sm:$0x3]
        %208 = vst [vmem:[#allocation1] ss:$2 sm:$0xff] %v205
        %v209 = vld.sshfl [vmem:[#allocation1] sm:$0xff pattern:$0x75316420]
        %v210 = vld.sshfl [vmem:[#allocation1 + $0x8] sm:$0xff pattern:$0x75316420]
        %vm213 = vcmask 1043456
        %v214 = vsel %vm213, %v209, 0.0
        %v215 = vrot.slane %v214, 4
        %v216 = vadd.f32 %v214, %v215
        %v217 = vrot.slane %v216, 2
        %v218 = vadd.f32 %v216, %v217
        %v219 = vrot.slane %v218, 1
        %v220 = vadd.f32 %v218, %v219
        %v221 = vsel %vm213, %v210, 0.0
        %v222 = vrot.slane %v221, 4
        %v223 = vadd.f32 %v221, %v222
        %v224 = vrot.slane %v223, 2
        %v225 = vadd.f32 %v223, %v224
        %v226 = vrot.slane %v225, 1
        %v227 = vadd.f32 %v225, %v226
        %v230 = vrot.slane %v227, 7
        %vm231 = vcmask 1040384
        %v232 = vsel %vm231, %v220, %v230
        %v234 = vadd.f32 %v206, %v232
        %v235 = vlaneseq
        %vm236 = vcmp.ge.s32.totalorder %v235, 0
        %vm237 = vcmp.lt.s32.totalorder %v235, 256
        %vm238 = vmand %vm236, %vm237
        %239 = vst.msk [vmem:[#allocation2] sm:$0x3] %vm238, %v234
        %v240 = vld [vmem:[#allocation3] sm:$0x3]
        %241 = vst [vmem:[#allocation1] ss:$2 sm:$0xff] %v205
        %v242 = vld.sshfl [vmem:[#allocation1] sm:$0xff pattern:$0x75316420]
        %v243 = vld.sshfl [vmem:[#allocation1 + $0x8] sm:$0xff pattern:$0x75316420]
        %v246 = vsel %vm213, %v242, -inf
        %v247 = vrot.slane %v246, 4
        %v248 = vmax.f32 %v246, %v247
        %v249 = vrot.slane %v248, 2
        %v250 = vmax.f32 %v248, %v249
        %v251 = vrot.slane %v250, 1
        %v252 = vmax.f32 %v250, %v251
        %v253 = vsel %vm213, %v243, -inf
        %v254 = vrot.slane %v253, 4
        %v255 = vmax.f32 %v253, %v254
        %v256 = vrot.slane %v255, 2
        %v257 = vmax.f32 %v255, %v256
        %v258 = vrot.slane %v257, 1
        %v259 = vmax.f32 %v257, %v258
        %v262 = vrot.slane %v259, 7
        %v263 = vsel %vm231, %v252, %v262
        %v265 = vmax.f32 %v240, %v263
        %266 = vst.msk [vmem:[#allocation3] sm:$0x3] %vm238, %v265
        // Predicated region
        $region41: #{tpu_custom_call.1} parent=27 // pred_check
          %p267 = pneg %p195
        $region42: #{tpu_custom_call.1} parent=27 // pred_check_branch
          %269 = sbr.rel (%p267) target = $region44
        $region43: #{tpu_custom_call.1} parent=27 // pred_region
          %v270 = vld [vmem:[#allocation2] sm:$0x3]
          %v271 = vld [vmem:[#allocation3] sm:$0x3]
          %v273 = vperm.slane %v270, 0
          %v274 = vperm.slane %v270, 1
          %277 = vrot.lane.b32.xlu0 %v273, 17
          %v278 = vpop.permute.xlu0 %277
          %279 = vrot.lane.b32.xlu0 %v274, 17
          %v280 = vpop.permute.xlu0 %279
          %v281 = vlaneseq
          %v282 = vand.u32 %v281, 127
          %vm283 = vcmp.lt.s32.totalorder %v282, 17
          %v284 = vsel %vm283, %v278, %v280
          %v285 = vsel %vm283, %v280, %v278
          %v287 = vperm.slane %v271, 0
          %v288 = vperm.slane %v271, 1
          %291 = vrot.lane.b32.xlu0 %v287, 17
          %v292 = vpop.permute.xlu0 %291
          %293 = vrot.lane.b32.xlu0 %v288, 17
          %v294 = vpop.permute.xlu0 %293
          %v295 = vsel %vm283, %v292, %v294
          %v296 = vsel %vm283, %v294, %v292
          %v297 = vld [vmem:[#allocation7] ss:$8 sm:$0x3]
          %s298 = scalar_lea.vmem [#allocation7], 17
          %v299 = vld [vmem:[%s298] ss:$8 sm:$0x3]
          %v302 = vrot.slane %v284, 7
          %v303 = vsel %vm231, %v285, %v302
          %v305 = vmul.f32 %v297, %v303
          %v306 = vadd.f32 %v305, 0.0
          %v309 = vrot.slane %v295, 7
          %v310 = vsel %vm231, %v296, %v309
          %v312 = vmul.f32 %v299, %v310
          %v313 = vadd.f32 %v306, %v312
          %314 = vrot.lane.b32.xlu0 %v273, 16
          %v315 = vpop.permute.xlu0 %314
          %316 = vrot.lane.b32.xlu0 %v274, 16
          %v317 = vpop.permute.xlu0 %316
          %vm318 = vcmp.lt.s32.totalorder %v282, 16
          %v319 = vsel %vm318, %v315, %v317
          %v320 = vsel %vm318, %v317, %v315
          %321 = vrot.lane.b32.xlu0 %v287, 16
          %v322 = vpop.permute.xlu0 %321
          %323 = vrot.lane.b32.xlu0 %v288, 16
          %v324 = vpop.permute.xlu0 %323
          %v325 = vsel %vm318, %v322, %v324
          %v326 = vsel %vm318, %v324, %v322
          %s327 = scalar_lea.vmem [#allocation7], 1
          %v328 = vld [vmem:[%s327] ss:$8 sm:$0x3]
          %s329 = scalar_lea.vmem [#allocation7], 18
          %v330 = vld [vmem:[%s329] ss:$8 sm:$0x3]
          %v333 = vrot.slane %v319, 7
          %v334 = vsel %vm231, %v320, %v333
          %v336 = vmul.f32 %v328, %v334
          %v337 = vadd.f32 %v313, %v336
          %v340 = vrot.slane %v325, 7
          %v341 = vsel %vm231, %v326, %v340
          %v343 = vmul.f32 %v330, %v341
          %v344 = vadd.f32 %v337, %v343
          %345 = vrot.lane.b32.xlu0 %v273, 15
          %v346 = vpop.permute.xlu0 %345
          %347 = vrot.lane.b32.xlu0 %v274, 15
          %v348 = vpop.permute.xlu0 %347
          %vm349 = vcmp.lt.s32.totalorder %v282, 15
          %v350 = vsel %vm349, %v346, %v348
          %v351 = vsel %vm349, %v348, %v346
          %352 = vrot.lane.b32.xlu0 %v287, 15
          %v353 = vpop.permute.xlu0 %352
          %354 = vrot.lane.b32.xlu0 %v288, 15
          %v355 = vpop.permute.xlu0 %354
          %v356 = vsel %vm349, %v353, %v355
          %v357 = vsel %vm349, %v355, %v353
          %s358 = scalar_lea.vmem [#allocation7], 2
          %v359 = vld [vmem:[%s358] ss:$8 sm:$0x3]
          %s360 = scalar_lea.vmem [#allocation7], 19
          %v361 = vld [vmem:[%s360] ss:$8 sm:$0x3]
          %v364 = vrot.slane %v350, 7
          %v365 = vsel %vm231, %v351, %v364
          %v367 = vmul.f32 %v359, %v365
          %v368 = vadd.f32 %v344, %v367
          %v371 = vrot.slane %v356, 7
          %v372 = vsel %vm231, %v357, %v371
          %v374 = vmul.f32 %v361, %v372
          %v375 = vadd.f32 %v368, %v374
          %376 = vrot.lane.b32.xlu0 %v273, 1
          %v377 = vpop.permute.xlu0 %376
          %378 = vrot.lane.b32.xlu0 %v274, 1
          %v379 = vpop.permute.xlu0 %378
          %vm380 = vcmp.lt.s32.totalorder %v282, 1
          %v381 = vsel %vm380, %v377, %v379
          %v382 = vsel %vm380, %v379, %v377
          %383 = vrot.lane.b32.xlu0 %v287, 1
          %v384 = vpop.permute.xlu0 %383
          %385 = vrot.lane.b32.xlu0 %v288, 1
          %v386 = vpop.permute.xlu0 %385
          %v387 = vsel %vm380, %v384, %v386
          %v388 = vsel %vm380, %v386, %v384
          %s389 = scalar_lea.vmem [#allocation7], 3
          %v390 = vld [vmem:[%s389] ss:$8 sm:$0x3]
          %s391 = scalar_lea.vmem [#allocation7], 20
          %v392 = vld [vmem:[%s391] ss:$8 sm:$0x3]
          %v395 = vrot.slane %v381, 7
          %v396 = vsel %vm231, %v382, %v395
          %v398 = vmul.f32 %v390, %v396
          %v399 = vadd.f32 %v375, %v398
          %v402 = vrot.slane %v387, 7
          %v403 = vsel %vm231, %v388, %v402
          %v405 = vmul.f32 %v392, %v403
          %v406 = vadd.f32 %v399, %v405
          %s407 = scalar_lea.vmem [#allocation7], 4
          %v408 = vld [vmem:[%s407] ss:$8 sm:$0x3]
          %s409 = scalar_lea.vmem [#allocation7], 21
          %v410 = vld [vmem:[%s409] ss:$8 sm:$0x3]
          %v411 = vmul.f32 %v408, %v270
          %v412 = vadd.f32 %v406, %v411
          %v413 = vmul.f32 %v410, %v271
          %v414 = vadd.f32 %v412, %v413
          %415 = vrot.lane.b32.xlu0 %v273, 127
          %v416 = vpop.permute.xlu0 %415
          %417 = vrot.lane.b32.xlu0 %v274, 127
          %v418 = vpop.permute.xlu0 %417
          %vm419 = vcmp.lt.s32.totalorder %v282, 127
          %v420 = vsel %vm419, %v416, %v418
          %v421 = vsel %vm419, %v418, %v416
          %422 = vrot.lane.b32.xlu0 %v287, 127
          %v423 = vpop.permute.xlu0 %422
          %424 = vrot.lane.b32.xlu0 %v288, 127
          %v425 = vpop.permute.xlu0 %424
          %v426 = vsel %vm419, %v423, %v425
          %v427 = vsel %vm419, %v425, %v423
          %s428 = scalar_lea.vmem [#allocation7], 5
          %v429 = vld [vmem:[%s428] ss:$8 sm:$0x3]
          %s430 = scalar_lea.vmem [#allocation7], 22
          %v431 = vld [vmem:[%s430] ss:$8 sm:$0x3]
          %v434 = vrot.slane %v421, 7
          %v435 = vsel %vm231, %v420, %v434
          %v437 = vmul.f32 %v429, %v435
          %v438 = vadd.f32 %v414, %v437
          %v441 = vrot.slane %v427, 7
          %v442 = vsel %vm231, %v426, %v441
          %v444 = vmul.f32 %v431, %v442
          %v445 = vadd.f32 %v438, %v444
          %446 = vrot.lane.b32.xlu0 %v273, 113
          %v447 = vpop.permute.xlu0 %446
          %448 = vrot.lane.b32.xlu0 %v274, 113
          %v449 = vpop.permute.xlu0 %448
          %vm450 = vcmp.lt.s32.totalorder %v282, 113
          %v451 = vsel %vm450, %v447, %v449
          %v452 = vsel %vm450, %v449, %v447
          %453 = vrot.lane.b32.xlu0 %v287, 113
          %v454 = vpop.permute.xlu0 %453
          %455 = vrot.lane.b32.xlu0 %v288, 113
          %v456 = vpop.permute.xlu0 %455
          %v457 = vsel %vm450, %v454, %v456
          %v458 = vsel %vm450, %v456, %v454
          %s459 = scalar_lea.vmem [#allocation7], 6
          %v460 = vld [vmem:[%s459] ss:$8 sm:$0x3]
          %s461 = scalar_lea.vmem [#allocation7], 23
          %v462 = vld [vmem:[%s461] ss:$8 sm:$0x3]
          %v465 = vrot.slane %v452, 7
          %v466 = vsel %vm231, %v451, %v465
          %v468 = vmul.f32 %v460, %v466
          %v469 = vadd.f32 %v445, %v468
          %v472 = vrot.slane %v458, 7
          %v473 = vsel %vm231, %v457, %v472
          %v475 = vmul.f32 %v462, %v473
          %v476 = vadd.f32 %v469, %v475
          %477 = vrot.lane.b32.xlu0 %v273, 112
          %v478 = vpop.permute.xlu0 %477
          %479 = vrot.lane.b32.xlu0 %v274, 112
          %v480 = vpop.permute.xlu0 %479
          %vm481 = vcmp.lt.s32.totalorder %v282, 112
          %v482 = vsel %vm481, %v478, %v480
          %v483 = vsel %vm481, %v480, %v478
          %484 = vrot.lane.b32.xlu0 %v287, 112
          %v485 = vpop.permute.xlu0 %484
          %486 = vrot.lane.b32.xlu0 %v288, 112
          %v487 = vpop.permute.xlu0 %486
          %v488 = vsel %vm481, %v485, %v487
          %v489 = vsel %vm481, %v487, %v485
          %s490 = scalar_lea.vmem [#allocation7], 7
          %v491 = vld [vmem:[%s490] ss:$8 sm:$0x3]
          %s492 = scalar_lea.vmem [#allocation7], 32
          %v493 = vld [vmem:[%s492] ss:$8 sm:$0x3]
          %v496 = vrot.slane %v483, 7
          %v497 = vsel %vm231, %v482, %v496
          %v499 = vmul.f32 %v491, %v497
          %v500 = vadd.f32 %v476, %v499
          %v503 = vrot.slane %v489, 7
          %v504 = vsel %vm231, %v488, %v503
          %v506 = vmul.f32 %v493, %v504
          %v507 = vadd.f32 %v500, %v506
          %508 = vrot.lane.b32.xlu0 %v273, 111
          %v509 = vpop.permute.xlu0 %508
          %510 = vrot.lane.b32.xlu0 %v274, 111
          %v511 = vpop.permute.xlu0 %510
          %vm512 = vcmp.lt.s32.totalorder %v282, 111
          %v513 = vsel %vm512, %v509, %v511
          %v514 = vsel %vm512, %v511, %v509
          %515 = vrot.lane.b32.xlu0 %v287, 111
          %v516 = vpop.permute.xlu0 %515
          %517 = vrot.lane.b32.xlu0 %v288, 111
          %v518 = vpop.permute.xlu0 %517
          %v519 = vsel %vm512, %v516, %v518
          %v520 = vsel %vm512, %v518, %v516
          %s521 = scalar_lea.vmem [#allocation7], 16
          %v522 = vld [vmem:[%s521] ss:$8 sm:$0x3]
          %s523 = scalar_lea.vmem [#allocation7], 33
          %v524 = vld [vmem:[%s523] ss:$8 sm:$0x3]
          %v527 = vrot.slane %v514, 7
          %v528 = vsel %vm231, %v513, %v527
          %v530 = vmul.f32 %v522, %v528
          %v531 = vadd.f32 %v507, %v530
          %v534 = vrot.slane %v520, 7
          %v535 = vsel %vm231, %v519, %v534
          %v537 = vmul.f32 %v524, %v535
          %v538 = vadd.f32 %v531, %v537
          %v539 = vxor.u32 %v538, 2147483648
          %v540 = vmul.f32 %v539, 1.442695
          %v541 = vpow.pop %v540
          %v542 = vadd.f32 %v541, 1.0
          %v543 = vrcp.pop %v542
          %v544 = vmul.f32 %v542, %v543
          %v545 = vsub.f32 1.0, %v544
          %v546 = vmul.f32 %v543, %v545
          %v547 = vadd.f32 %v543, %v546
          %vm548 = vweird.f32 %v542
          %vm549 = vweird.f32 %v543
          %vm550 = vmor %vm548, %vm549
          %v551 = vsel %vm550, %v543, %v547
          %v552 = vand.u32 2147483647, %v542
          %vm553 = vcmp.eq.f32.partialorder %v552, 8.507059e+37
          %v554 = vand.u32 %v542, 2147483648
          %v555 = vor.u32 1.1754944e-38, %v554
          %v556 = vsel %vm553, %v555, %v551
          %v557 = vmul.f32 1.0, %v556
          %558 = vst.msk [vmem:[%s194] sm:$0x3] %vm238, %v557
        $region44: #{tpu_custom_call.1} parent=27 // pred_fallthru
          _
        %s559 = sand.u32 %s89, 1
        %s560 = scalar_lea.sflag [#allocation6], %s559
        %s561 = sand.u32 %s89, 1
        %s562 = smul.addr %s561, 2
        %s563 = scalar_lea.vmem [#allocation9], %s562
        // Predicated region
        $region45: #{tpu_custom_call.1} parent=27 // pred_check
          %p564 = pneg %p99
        $region46: #{tpu_custom_call.1} parent=27 // pred_check_branch
          %566 = sbr.rel (%p564) target = $region48
        $region47: #{tpu_custom_call.1} parent=27 // pred_region
          %568 = vsyncadd %s560, 0
          %s569 = smul.addr %s24, 2
          %s570 = scalar_lea.hbm %s2, %s569
          %s572 = sshll.u32 %s563, 4
          %s573 = int_to_ptr.vmem [resolvable:$true] %s572
          %s574 = sshll.u32 %s570, 4
          %s575 = int_to_ptr.hbm [resolvable:$true] %s574
          %577 = dma.vmem_to_hbm [thread:$0]  %s573, 32, %s575, %s560
        $region48: #{tpu_custom_call.1} parent=27 // pred_fallthru
          _
      $region28: #{tpu_custom_call.1} parent=5 // pred_fallthru
        _
      %p578 = scmp.le.s32.totalorder 2, %s15
      // Predicated region
      $region49: #{tpu_custom_call.1} parent=5 // pred_check
        %p579 = pneg %p578
      $region50: #{tpu_custom_call.1} parent=5 // pred_check_branch
        %581 = sbr.rel (%p579) target = $region52
      $region51: #{tpu_custom_call.1} parent=5 // pred_region
        %s582 = ssub.s32 %s15, 2
        // Predicated region
        $region53: #{tpu_custom_call.1} parent=51 // pred_check
          %p583 = pneg %p105
        $region54: #{tpu_custom_call.1} parent=51 // pred_check_branch
          %585 = sbr.rel (%p583) target = $region56
        $region55: #{tpu_custom_call.1} parent=51 // pred_region
          %s586 = sand.u32 %s90, 1
          %s587 = scalar_lea.sflag [#allocation6], %s586
          %s588 = sand.u32 %s90, 1
          %s589 = smul.addr %s588, 2
          %s590 = scalar_lea.vmem [#allocation9], %s589
          %592 = dma.done %s587, 32
        $region56: #{tpu_custom_call.1} parent=51 // pred_fallthru
          _
      $region52: #{tpu_custom_call.1} parent=5 // pred_fallthru
        _
    $region6: #{tpu_custom_call.1} parent=1 // loop_footer
      %s19 = sadd.s32 1, %s15
    $region7: #{tpu_custom_call.1} parent=1 // loop_footer_branch
      %14 = sbr.rel target = $region3
    $region8: #{tpu_custom_call.1} parent=1 // loop_exit
      _
    %593 = vsyncpa [#allocation5], 1
    %s594 = scalar_lea.sflag [#allocation5], 1
    %595 = vsyncpa %s594, 1
    %596 = vsyncpa [#allocation8], 1
    %597 = vsyncpa [#allocation6], 1
    %s598 = scalar_lea.sflag [#allocation6], 1
    %599 = vsyncpa %s598, 1

</llo_original>
